<compile_context>
chip_gen: v5e
topology: v5e:2x2
jax: 0.10.0
libtpu: 0.0.40
codegen_flags: <defaults>
</compile_context>

<pallas_src>
import functools

import jax
import jax.numpy as jnp
from jax.experimental import pallas as pl
from jax.experimental.pallas import tpu as pltpu  # noqa: F401  (TPU backend)


def cooperation_kernel(x_ref, w_ref, s_ref, out_ref, *, num_prototypes):
    x = x_ref[...]          # (P+C, D+1)
    w = w_ref[...]          # (D+1, E*O)
    s = s_ref[...]          # (E*O, O)  block-identity expert-sum matrix

    # Single fused, lane-dense MXU matmul for prototypes AND centers.
    # The appended 1/0 column contracted with the appended bias row folds the
    # expert biases into the prototype-side rows.
    r = jnp.dot(x, w, preferred_element_type=jnp.float32)     # (P+C, E*O)
    a = r[:num_prototypes, :]       # proto@W + b  (P, E*O)  static sublane slice
    c = r[num_prototypes:, :]       # centers@W    (C, E*O)

    # Exact decomposition: (proto[p] - center[j]) @ W + b == a[p] - c[j].
    # Cluster reduction as an unrolled accumulation: the (P, C, E*O) broadcast
    # tensor is never materialized, live state stays O(P*E*O).
    num_clusters = c.shape[0]
    acc = jnp.zeros_like(a)
    for j in range(num_clusters):                             # static, fully unrolled
        acc = acc + jnp.maximum(a - c[j:j + 1, :], 0.0)

    # Sum over the E expert chunks with one small matmul against the constant
    # block-identity matrix (MXU) instead of masked 32-lane slice adds.
    out_ref[...] = jnp.dot(acc, s,
                           preferred_element_type=jnp.float32).astype(out_ref.dtype)


def prepare_cooperation_params(weights, biases):
    """One-time (init-time) parameter prep.

    weights: (E, D, O) stacked so that x @ weights[e] == Linear_e(x)
             (i.e. weights[e] == torch Linear.weight.T).
    biases : (E, O)
    """
    E, D, O = weights.shape
    w_stack = jnp.transpose(weights, (1, 0, 2)).reshape(D, E * O)   # (D, E*O)
    b_stack = biases.reshape(1, E * O)                              # (1, E*O)
    w_aug = jnp.concatenate([w_stack, b_stack], axis=0)             # (D+1, E*O)
    sum_mat = jnp.tile(jnp.eye(O, dtype=jnp.float32), (E, 1))       # (E*O, O)
    return w_aug, sum_mat


def cooperation_module(class_prototypes, cluster_centers, w_aug, sum_mat):
    """class_prototypes (P, D), cluster_centers (C, D)."""
    P, D = class_prototypes.shape
    C, _ = cluster_centers.shape
    EO, O = sum_mat.shape

    # Fuse prototype and center rows into one matmul operand; the extra column
    # (1 for prototypes, 0 for centers) carries the folded bias.
    x = jnp.concatenate(
        [jnp.concatenate([class_prototypes,
                          jnp.ones((P, 1), class_prototypes.dtype)], axis=1),
         jnp.concatenate([cluster_centers,
                          jnp.zeros((C, 1), cluster_centers.dtype)], axis=1)],
        axis=0)                                                     # (P+C, D+1)

    kernel = functools.partial(cooperation_kernel, num_prototypes=P)

    # Everything fits comfortably in VMEM at these sizes -> gridless call, each
    # operand a single resident block (no grid-step tax, no accumulator RMW).
    # TODO(synk): if P/C grow large, add a "parallel" grid axis over P-tiles
    # (shards across v7x's 2 TensorCores) and an "arbitrary" C reduction axis
    # with a pl.when(c==0) accumulator init, and budget vmem_limit_bytes below
    # v7x's 64 MiB (BlockSpec double-buffers each input).
    return pl.pallas_call(
        kernel,
        out_shape=jax.ShapeDtypeStruct((P, O), jnp.float32),
        in_specs=[
            pl.BlockSpec((P + C, D + 1), lambda: (0, 0)),
            pl.BlockSpec((D + 1, EO), lambda: (0, 0)),
            pl.BlockSpec((EO, O), lambda: (0, 0)),
        ],
        out_specs=pl.BlockSpec((P, O), lambda: (0, 0)),
    )(x, w_aug, sum_mat)


def reference(class_prototypes, cluster_centers, weights, biases):
    # Pure-JAX reference mirroring the PyTorch forward exactly.
    P, D = class_prototypes.shape
    C, _ = cluster_centers.shape
    offsets = (class_prototypes[:, None, :] -
               cluster_centers[None, :, :]).reshape(-1, D)          # (P*C, D)
    out = 0.0
    for e in range(weights.shape[0]):
        y = jax.nn.relu(offsets @ weights[e] + biases[e])           # (P*C, O)
        y = y.reshape(P, C, -1).sum(axis=1)                         # (P, O)
        out = out + y
    return out


if __name__ == "__main__":
    # Small shapes implied by the module: prototypes x clusters x feature dim,
    # a handful of experts.
    num_experts = 4
    feature_dim = 32        # input_dim
    output_dim = 32
    num_prototypes = 8
    num_clusters = 8

    key = jax.random.PRNGKey(0)
    k_p, k_c, k_w, k_b = jax.random.split(key, 4)

    class_prototypes = jax.random.normal(
        k_p, (num_prototypes, feature_dim), dtype=jnp.float32)
    cluster_centers = jax.random.normal(
        k_c, (num_clusters, feature_dim), dtype=jnp.float32)

    # Deterministic expert parameters (PyTorch-style uniform(-1/sqrt(D), 1/sqrt(D))).
    bound = 1.0 / (feature_dim ** 0.5)
    weights = jax.random.uniform(
        k_w, (num_experts, feature_dim, output_dim),
        minval=-bound, maxval=bound, dtype=jnp.float32)
    biases = jax.random.uniform(
        k_b, (num_experts, output_dim),
        minval=-bound, maxval=bound, dtype=jnp.float32)

    # Hoisted once: stacked/bias-folded weights + expert-sum matrix.
    w_aug, sum_mat = prepare_cooperation_params(weights, biases)

    forward = jax.jit(cooperation_module)
    out = jax.block_until_ready(
        forward(class_prototypes, cluster_centers, w_aug, sum_mat))

    ref = reference(class_prototypes, cluster_centers, weights, biases)
    assert out.shape == (num_prototypes, output_dim)
    assert jnp.allclose(out, ref, atol=1e-4, rtol=1e-4), "mismatch vs reference"

    print("KERNEL_OK")
</pallas_src>

<mosaic_0001>
module attributes {stable_mosaic.version = 11 : i64} {
  func.func @cooperation_kernel(%arg0: memref<16x33xf32, #tpu.memory_space<vmem>>, %arg1: memref<33x128xf32, #tpu.memory_space<vmem>>, %arg2: memref<128x32xf32, #tpu.memory_space<vmem>>, %arg3: memref<8x32xf32, #tpu.memory_space<vmem>>) attributes {dimension_semantics = [], scalar_prefetch = 0 : i64, scratch_operands = 0 : i64, tpu.core_type = #tpu.core_type<tc>} {
    %c0 = arith.constant 0 : index
    %c0_0 = arith.constant 0 : index
    %0 = vector.load %arg0[%c0, %c0_0] : memref<16x33xf32, #tpu.memory_space<vmem>>, vector<16x33xf32>
    %c0_1 = arith.constant 0 : index
    %c0_2 = arith.constant 0 : index
    %1 = vector.load %arg1[%c0_1, %c0_2] : memref<33x128xf32, #tpu.memory_space<vmem>>, vector<33x128xf32>
    %c0_3 = arith.constant 0 : index
    %c0_4 = arith.constant 0 : index
    %2 = vector.load %arg2[%c0_3, %c0_4] : memref<128x32xf32, #tpu.memory_space<vmem>>, vector<128x32xf32>
    %cst = arith.constant dense<0.000000e+00> : vector<16x128xf32>
    %3 = tpu.matmul %0, %1, %cst {dimension_numbers = #tpu.dot_dimension_numbers<[1], [0], [0], [1], [0, 0, 1, 1], [], []>} : vector<16x33xf32>, vector<33x128xf32>, vector<16x128xf32> -> vector<16x128xf32>
    %4 = vector.extract_strided_slice %3 {offsets = [0, 0], sizes = [8, 128], strides = [1, 1]} : vector<16x128xf32> to vector<8x128xf32>
    %5 = vector.extract_strided_slice %3 {offsets = [8, 0], sizes = [8, 128], strides = [1, 1]} : vector<16x128xf32> to vector<8x128xf32>
    %cst_5 = arith.constant 0.000000e+00 : f32
    %6 = vector.broadcast %cst_5 : f32 to vector<8x128xf32>
    %7 = vector.extract_strided_slice %5 {offsets = [0, 0], sizes = [1, 128], strides = [1, 1]} : vector<8x128xf32> to vector<1x128xf32>
    %8 = vector.broadcast %7 : vector<1x128xf32> to vector<8x128xf32>
    %9 = arith.subf %4, %8 : vector<8x128xf32>
    %cst_6 = arith.constant 0.000000e+00 : f32
    %10 = vector.broadcast %cst_6 : f32 to vector<8x128xf32>
    %11 = arith.maximumf %9, %10 : vector<8x128xf32>
    %12 = arith.addf %6, %11 : vector<8x128xf32>
    %13 = vector.extract_strided_slice %5 {offsets = [1, 0], sizes = [1, 128], strides = [1, 1]} : vector<8x128xf32> to vector<1x128xf32>
    %14 = vector.broadcast %13 : vector<1x128xf32> to vector<8x128xf32>
    %15 = arith.subf %4, %14 : vector<8x128xf32>
    %cst_7 = arith.constant 0.000000e+00 : f32
    %16 = vector.broadcast %cst_7 : f32 to vector<8x128xf32>
    %17 = arith.maximumf %15, %16 : vector<8x128xf32>
    %18 = arith.addf %12, %17 : vector<8x128xf32>
    %19 = vector.extract_strided_slice %5 {offsets = [2, 0], sizes = [1, 128], strides = [1, 1]} : vector<8x128xf32> to vector<1x128xf32>
    %20 = vector.broadcast %19 : vector<1x128xf32> to vector<8x128xf32>
    %21 = arith.subf %4, %20 : vector<8x128xf32>
    %cst_8 = arith.constant 0.000000e+00 : f32
    %22 = vector.broadcast %cst_8 : f32 to vector<8x128xf32>
    %23 = arith.maximumf %21, %22 : vector<8x128xf32>
    %24 = arith.addf %18, %23 : vector<8x128xf32>
    %25 = vector.extract_strided_slice %5 {offsets = [3, 0], sizes = [1, 128], strides = [1, 1]} : vector<8x128xf32> to vector<1x128xf32>
    %26 = vector.broadcast %25 : vector<1x128xf32> to vector<8x128xf32>
    %27 = arith.subf %4, %26 : vector<8x128xf32>
    %cst_9 = arith.constant 0.000000e+00 : f32
    %28 = vector.broadcast %cst_9 : f32 to vector<8x128xf32>
    %29 = arith.maximumf %27, %28 : vector<8x128xf32>
    %30 = arith.addf %24, %29 : vector<8x128xf32>
    %31 = vector.extract_strided_slice %5 {offsets = [4, 0], sizes = [1, 128], strides = [1, 1]} : vector<8x128xf32> to vector<1x128xf32>
    %32 = vector.broadcast %31 : vector<1x128xf32> to vector<8x128xf32>
    %33 = arith.subf %4, %32 : vector<8x128xf32>
    %cst_10 = arith.constant 0.000000e+00 : f32
    %34 = vector.broadcast %cst_10 : f32 to vector<8x128xf32>
    %35 = arith.maximumf %33, %34 : vector<8x128xf32>
    %36 = arith.addf %30, %35 : vector<8x128xf32>
    %37 = vector.extract_strided_slice %5 {offsets = [5, 0], sizes = [1, 128], strides = [1, 1]} : vector<8x128xf32> to vector<1x128xf32>
    %38 = vector.broadcast %37 : vector<1x128xf32> to vector<8x128xf32>
    %39 = arith.subf %4, %38 : vector<8x128xf32>
    %cst_11 = arith.constant 0.000000e+00 : f32
    %40 = vector.broadcast %cst_11 : f32 to vector<8x128xf32>
    %41 = arith.maximumf %39, %40 : vector<8x128xf32>
    %42 = arith.addf %36, %41 : vector<8x128xf32>
    %43 = vector.extract_strided_slice %5 {offsets = [6, 0], sizes = [1, 128], strides = [1, 1]} : vector<8x128xf32> to vector<1x128xf32>
    %44 = vector.broadcast %43 : vector<1x128xf32> to vector<8x128xf32>
    %45 = arith.subf %4, %44 : vector<8x128xf32>
    %cst_12 = arith.constant 0.000000e+00 : f32
    %46 = vector.broadcast %cst_12 : f32 to vector<8x128xf32>
    %47 = arith.maximumf %45, %46 : vector<8x128xf32>
    %48 = arith.addf %42, %47 : vector<8x128xf32>
    %49 = vector.extract_strided_slice %5 {offsets = [7, 0], sizes = [1, 128], strides = [1, 1]} : vector<8x128xf32> to vector<1x128xf32>
    %50 = vector.broadcast %49 : vector<1x128xf32> to vector<8x128xf32>
    %51 = arith.subf %4, %50 : vector<8x128xf32>
    %cst_13 = arith.constant 0.000000e+00 : f32
    %52 = vector.broadcast %cst_13 : f32 to vector<8x128xf32>
    %53 = arith.maximumf %51, %52 : vector<8x128xf32>
    %54 = arith.addf %48, %53 : vector<8x128xf32>
    %cst_14 = arith.constant dense<0.000000e+00> : vector<8x32xf32>
    %55 = tpu.matmul %54, %2, %cst_14 {dimension_numbers = #tpu.dot_dimension_numbers<[1], [0], [0], [1], [0, 0, 1, 1], [], []>} : vector<8x128xf32>, vector<128x32xf32>, vector<8x32xf32> -> vector<8x32xf32>
    %c0_15 = arith.constant 0 : index
    %c0_16 = arith.constant 0 : index
    %56 = vector.load %arg3[%c0_15, %c0_16] : memref<8x32xf32, #tpu.memory_space<vmem>>, vector<8x32xf32>
    tpu.vector_store %arg3[%c0_15, %c0_16], %55 {strides = array<i32>} : memref<8x32xf32, #tpu.memory_space<vmem>>, vector<8x32xf32>,
    return
  }
}

</mosaic_0001>

<llo_original>
// kernel: cooperation_module.1
$region0: #{cooperation_module.1}
  #allocation0 [shape = 'u32[]', space=smem, size = 0x4, offset = 0x4, fixed_abs, tag = 'smem constant byte address 0x4 - core index']
  #allocation1 [shape = 'u32[72,128]{1,0:T(1,128)}', space=vmem, size = 0x9000, scoped, tag = 'internal scratch']
  %s0 = inlined_call_operand.vmem [shape: f32[16,33], index: 0, kind: input, shape index: {}]
  %s1 = inlined_call_operand.vmem [shape: f32[33,128], index: 1, kind: input, shape index: {}]
  %s2 = inlined_call_operand.vmem [shape: f32[128,32], index: 2, kind: input, shape index: {}]
  %s3 = inlined_call_operand.hbm [shape: f32[8,32], index: 3, kind: output, shape index: {}]
  %s4 = sld [smem:[#allocation0]]
  $region22: #{cooperation_module.1} parent=0
    _
  %s6 = ssub.s32 1, %s4
  %s7 = scalar_select 0, %s6, %s4
  $region1: #{cooperation_module.1} parent=0
    #allocation2 [shape = 'u8[4096]{0}', space=vmem, size = 0x1000, scoped, tag = 'output window, operand 0, single buffered']
    #allocation3 [shape = 's32[1]{0}', space=sflag, size = 0x4, scoped, tag = 'scoped memory for cooperation_module.1']
    %8 = vsyncpa [#allocation3], 0
    // Predicated region
    $region2: #{cooperation_module.1} parent=1 // pred_check
      _
    $region3: #{cooperation_module.1} parent=1 // pred_check_branch
      %10 = sbr.rel (0) target = $region5
    $region4: #{cooperation_module.1} parent=1 // pred_region
      _
    $region5: #{cooperation_module.1} parent=1 // pred_fallthru
      _
    // Predicated region
    $region6: #{cooperation_module.1} parent=1 // pred_check
      _
    $region7: #{cooperation_module.1} parent=1 // pred_check_branch
      %12 = sbr.rel (0) target = $region9
    $region8: #{cooperation_module.1} parent=1 // pred_region
      _
    $region9: #{cooperation_module.1} parent=1 // pred_fallthru
      _
    // Predicated region
    $region10: #{cooperation_module.1} parent=1 // pred_check
      _
    $region11: #{cooperation_module.1} parent=1 // pred_check_branch
      %14 = sbr.rel (0) target = $region13
    $region12: #{cooperation_module.1} parent=1 // pred_region
      _
    $region13: #{cooperation_module.1} parent=1 // pred_fallthru
      _
    %v15 = vld [vmem:[%s0] sm:$0xff]
    %v16 = vld [vmem:[%s0 + $0x8] sm:$0xff]
    %v17 = vld [vmem:[%s1] sm:$0xff]
    %v18 = vld [vmem:[%s1 + $0x8] sm:$0xff]
    %v19 = vld [vmem:[%s1 + $0x10] sm:$0xff]
    %v20 = vld [vmem:[%s1 + $0x18] sm:$0xff]
    %v21 = vld [vmem:[%s1 + $0x20] sm:$0x1]
    %v22 = vld [vmem:[%s2] sm:$0xff]
    %v23 = vld [vmem:[%s2 + $0x8] sm:$0xff]
    %v24 = vld [vmem:[%s2 + $0x10] sm:$0xff]
    %v25 = vld [vmem:[%s2 + $0x18] sm:$0xff]
    %v26 = vld [vmem:[%s2 + $0x20] sm:$0xff]
    %v27 = vld [vmem:[%s2 + $0x28] sm:$0xff]
    %v28 = vld [vmem:[%s2 + $0x30] sm:$0xff]
    %v29 = vld [vmem:[%s2 + $0x38] sm:$0xff]
    %v30 = vld [vmem:[%s2 + $0x40] sm:$0xff]
    %v31 = vld [vmem:[%s2 + $0x48] sm:$0xff]
    %v32 = vld [vmem:[%s2 + $0x50] sm:$0xff]
    %v33 = vld [vmem:[%s2 + $0x58] sm:$0xff]
    %v34 = vld [vmem:[%s2 + $0x60] sm:$0xff]
    %v35 = vld [vmem:[%s2 + $0x68] sm:$0xff]
    %v36 = vld [vmem:[%s2 + $0x70] sm:$0xff]
    %v37 = vld [vmem:[%s2 + $0x78] sm:$0xff]
    %vm38 = vcmask 269312
    %v40 = vsel %vm38, %v15, 0
    %v43 = vsel %vm38, %v16, 0
    %vm45 = vcmask 1040384
    %v47 = vsel %vm45, %v21, 0
    %49 = vmatpush.msra.mxu0 0.0
    %50 = vmatpush.msra.mxu0 0.0
    %51 = vmatpush.msra.mxu0 0.0
    %52 = vmatpush.msra.mxu0 0.0
    %53 = vmatpush.msra.mxu0 0.0
    %54 = vmatpush.msra.mxu0 0.0
    %55 = vmatpush.msra.mxu0 0.0
    %56 = vmatpush.msra.mxu0 0.0
    %57 = vmatpush.msra.mxu0 0.0
    %58 = vmatpush.msra.mxu0 0.0
    %59 = vmatpush.msra.mxu0 0.0
    %60 = vmatpush.msra.mxu0 %v47
    %61 = vmatpush.msra.mxu0 %v20
    %62 = vmatpush.msra.mxu0 %v19
    %63 = vmatpush.msra.mxu0 %v18
    %64 = vmatpush.msra.mxu0 %v17
    %65 = vmatmul.f32.gmra.mxu0 %v40
    %v66 = vpop.f32.mrf.mxu0
    %v67 = vadd.f32 0.0, %v66
    %68 = vmatmul.f32.gmra.mxu0 %v43
    %v69 = vpop.f32.mrf.mxu0
    %v70 = vadd.f32 0.0, %v69
    %71 = vdwg.mxu0
    %v72 = vperm.slane %v70, 0
    %v73 = vsub.f32 %v67, %v72
    %v74 = vmax.f32 %v73, 0.0
    %v75 = vadd.f32 %v74, 0.0
    %v76 = vperm.slane %v70, 1
    %v77 = vsub.f32 %v67, %v76
    %v78 = vmax.f32 %v77, 0.0
    %v79 = vadd.f32 %v75, %v78
    %v80 = vperm.slane %v70, 2
    %v81 = vsub.f32 %v67, %v80
    %v82 = vmax.f32 %v81, 0.0
    %v83 = vadd.f32 %v79, %v82
    %v84 = vperm.slane %v70, 3
    %v85 = vsub.f32 %v67, %v84
    %v86 = vmax.f32 %v85, 0.0
    %v87 = vadd.f32 %v83, %v86
    %v88 = vperm.slane %v70, 4
    %v89 = vsub.f32 %v67, %v88
    %v90 = vmax.f32 %v89, 0.0
    %v91 = vadd.f32 %v87, %v90
    %v92 = vperm.slane %v70, 5
    %v93 = vsub.f32 %v67, %v92
    %v94 = vmax.f32 %v93, 0.0
    %v95 = vadd.f32 %v91, %v94
    %v96 = vperm.slane %v70, 6
    %v97 = vsub.f32 %v67, %v96
    %v98 = vmax.f32 %v97, 0.0
    %v99 = vadd.f32 %v95, %v98
    %v100 = vperm.slane %v70, 7
    %v101 = vsub.f32 %v67, %v100
    %v102 = vmax.f32 %v101, 0.0
    %v103 = vadd.f32 %v99, %v102
    %104 = vmatpush.msra.mxu0 %v37
    %105 = vmatpush.msra.mxu0 %v36
    %106 = vmatpush.msra.mxu0 %v35
    %107 = vmatpush.msra.mxu0 %v34
    %108 = vmatpush.msra.mxu0 %v33
    %109 = vmatpush.msra.mxu0 %v32
    %110 = vmatpush.msra.mxu0 %v31
    %111 = vmatpush.msra.mxu0 %v30
    %112 = vmatpush.msra.mxu0 %v29
    %113 = vmatpush.msra.mxu0 %v28
    %114 = vmatpush.msra.mxu0 %v27
    %115 = vmatpush.msra.mxu0 %v26
    %116 = vmatpush.msra.mxu0 %v25
    %117 = vmatpush.msra.mxu0 %v24
    %118 = vmatpush.msra.mxu0 %v23
    %119 = vmatpush.msra.mxu0 %v22
    %120 = vmatmul.f32.gmra.mxu0 %v103
    %v121 = vpop.f32.mrf.mxu0
    %v122 = vadd.f32 0.0, %v121
    %123 = vdwg.mxu0
    %vm124 = vcmask 261120
    %125 = vst.msk [vmem:[#allocation2] sm:$0xff] %vm124, %v122
    // Predicated region
    $region14: #{cooperation_module.1} parent=1 // pred_check
      _
    $region15: #{cooperation_module.1} parent=1 // pred_check_branch
      %127 = sbr.rel (0) target = $region17
    $region16: #{cooperation_module.1} parent=1 // pred_region
      %129 = vsyncadd [#allocation3], 0
      %s131 = sshll.u32 [#allocation2], 4
      %s132 = int_to_ptr.vmem [resolvable:$true] %s131
      %s133 = sshll.u32 %s3, 4
      %s134 = int_to_ptr.hbm [resolvable:$true] %s133
      %136 = dma.vmem_to_hbm [thread:$0]  %s132, 128, %s134, [#allocation3]
    $region17: #{cooperation_module.1} parent=1 // pred_fallthru
      _
    // Predicated region
    $region18: #{cooperation_module.1} parent=1 // pred_check
      _
    $region19: #{cooperation_module.1} parent=1 // pred_check_branch
      %138 = sbr.rel (0) target = $region21
    $region20: #{cooperation_module.1} parent=1 // pred_region
      %140 = dma.done [#allocation3], 128
    $region21: #{cooperation_module.1} parent=1 // pred_fallthru
      _
    %141 = vsyncpa [#allocation3], 1

</llo_original>
